<compile_context>
chip_gen: v7x
topology: tpu7x:2x2x1
jax: 0.10.0
libtpu: 0.0.40
codegen_flags: <defaults>
</compile_context>

<pallas_src>
import jax
import jax.numpy as jnp
from jax.experimental import pallas as pl
from jax.experimental.pallas import tpu as pltpu

_SUB = 8      # sublane quantum
_LANE = 128   # lane quantum


def _round_up(x: int, m: int) -> int:
    return ((x + m - 1) // m) * m


def _cdiv(a: int, b: int) -> int:
    return -(-a // b)


def _pwl_kernel(y_ref, p_ref, o_ref, acc_ref):
    """Grid = (batch_tiles, d_tiles); axis 1 (d) is the trailing reduction axis.

    p_ref rows: 0 = beta1, 1 = beta2, 2 = thresholds, 3 = shift = (b2-b1)*th,
    rows 4..7 are zero padding.  acc_ref is a (tb, 128) f32 lane-chunk
    partial-sum accumulator (VPU-only in the streaming loop).
    """
    k = pl.program_id(1)
    nk = pl.num_programs(1)

    @pl.when(k == 0)
    def _init():
        acc_ref[...] = jnp.zeros_like(acc_ref)

    tb, td = y_ref.shape
    n_chunks = td // _LANE

    # VPU-only partial sums: one 128-lane chunk at a time, folded into a single
    # (tb, 128) running partial.  Static 128-aligned ref slices => no relayout,
    # no XLU/MXU work in the streaming loop.
    partial = None
    for c in range(n_chunks):
        lo = c * _LANE
        hi = lo + _LANE
        y = y_ref[:, lo:hi].astype(jnp.float32)      # (tb, 128); bf16-safe upcast
        b1 = p_ref[0:1, lo:hi]                       # (1, 128) broadcast over rows
        b2 = p_ref[1:2, lo:hi]
        th = p_ref[2:3, lo:hi]
        sh = p_ref[3:4, lo:hi]
        u = jnp.where(y < th, y * b1 + sh, y * b2)   # (tb, 128) f32
        partial = u if partial is None else partial + u
    acc_ref[...] += partial

    @pl.when(k == nk - 1)
    def _finalize():
        # Lane-densify once per batch tile: ones(8,128) . acc(tb,128)^T -> (8, tb).
        # Every output row holds the identical per-row sums; keep row 0 as the
        # lane-dense (1, tb) output block.  HIGHEST precision on this one tiny
        # dot keeps the reduction ~f32-accurate.
        ones = jnp.ones((8, _LANE), jnp.float32)
        sums = jax.lax.dot_general(
            ones, acc_ref[...],
            dimension_numbers=(((1,), (1,)), ((), ())),
            preferred_element_type=jnp.float32,
            precision=jax.lax.Precision.HIGHEST,
        )                                            # (8, tb)
        o_ref[...] = sums[0:1, :].astype(o_ref.dtype)


def piecewise_linear_forward(Y, beta1, beta2, thresholds, *,
                             tile_b: int = 1024,
                             tile_d: int = 2048,
                             vmem_limit_bytes: int = 48 * 1024 * 1024):
    """Y: (..., D). beta1/beta2/thresholds broadcastable to (D,). Returns (...)."""
    Y = jnp.asarray(Y)
    out_dtype = Y.dtype
    batch_shape = Y.shape[:-1]
    D = Y.shape[-1]
    Y2 = Y.reshape(-1, D)
    B = Y2.shape[0]
    itemsize = jnp.dtype(Y2.dtype).itemsize

    # Parameters as f32 rows; shift precomputed once in the wrapper.
    b1 = jnp.broadcast_to(jnp.asarray(beta1, jnp.float32).reshape(-1), (D,))
    b2 = jnp.broadcast_to(jnp.asarray(beta2, jnp.float32).reshape(-1), (D,))
    th = jnp.broadcast_to(jnp.asarray(thresholds, jnp.float32).reshape(-1), (D,))
    shift = (b2 - b1) * th
    params = jnp.stack([b1, b2, th, shift], axis=0)          # (4, D)

    # ---- batch tiling ------------------------------------------------------
    B8 = _round_up(B, _SUB)
    if B8 <= 2 * _LANE:
        # Small batch: single tile rounded only to the sublane quantum (8), so
        # we don't amplify HBM reads by padding B up to 128.  The (1, tb) output
        # block then equals the full output dims, so lane alignment is moot.
        tb, B_pad = B8, B8
    else:
        B128 = _round_up(B, _LANE)
        tb_cap = max(_LANE, _round_up(min(tile_b, B128), _LANE))
        n_bt = max(2, _cdiv(B128, tb_cap))   # >= 2 batch tiles -> both v7x cores fed
        tb = _round_up(_cdiv(B128, n_bt), _LANE)
        B_pad = _round_up(B128, tb)

    # ---- feature (reduction) tiling ---------------------------------------
    D128 = _round_up(D, _LANE)
    td = min(max(_LANE, _round_up(tile_d, _LANE)), D128)     # prefer a single k step
    y_budget = max(2 * _LANE * _LANE * itemsize, vmem_limit_bytes // 2)
    if 2 * tb * td * itemsize > y_budget:                    # keep 2x Y buffers modest
        td = max(_LANE, (y_budget // (2 * tb * itemsize)) // _LANE * _LANE)
    D_pad = _round_up(D128, td)

    # ---- zero padding (semantics-preserving) -------------------------------
    # Padded columns: y = 0, th = 0 -> (y < th) False -> util = 0 * b2 = 0.
    # Padded rows produce garbage sums that are sliced off below.
    if (B_pad, D_pad) != (B, D):
        Y2 = jnp.pad(Y2, ((0, B_pad - B), (0, D_pad - D)))
    params = jnp.pad(params, ((0, 8 - params.shape[0]), (0, D_pad - D)))  # (8, D_pad)

    grid = (B_pad // tb, D_pad // td)

    out = pl.pallas_call(
        _pwl_kernel,
        out_shape=jax.ShapeDtypeStruct((1, B_pad), out_dtype),
        grid_spec=pltpu.PrefetchScalarGridSpec(
            num_scalar_prefetch=0,
            grid=grid,
            in_specs=[
                pl.BlockSpec((tb, td), lambda i, k: (i, k)),   # Y tile
                pl.BlockSpec((8, td), lambda i, k: (0, k)),    # stacked params
            ],
            # Lane-dense output row: (1, tb) blocks of the (1, B_pad) output.
            out_specs=pl.BlockSpec((1, tb), lambda i, k: (0, i)),
            scratch_shapes=[pltpu.VMEM((tb, _LANE), jnp.float32)],
        ),
        compiler_params=pltpu.CompilerParams(
            dimension_semantics=("parallel", "arbitrary"),
            vmem_limit_bytes=vmem_limit_bytes,
        ),
    )(Y2, params)

    return out[0, :B].reshape(batch_shape)


def _reference(Y, beta1, beta2, thresholds):
    b1 = jnp.broadcast_to(beta1, Y.shape)
    b2 = jnp.broadcast_to(beta2, Y.shape)
    th = jnp.broadcast_to(thresholds, Y.shape)
    util = jnp.where(Y < th, Y * b1 + (b2 - b1) * th, Y * b2)
    return util.sum(axis=-1)


if __name__ == "__main__":
    root_key = jax.random.PRNGKey(0)

    def run_case(B, D, **kw):
        kY, k1, k2, k3 = jax.random.split(jax.random.fold_in(root_key, B * 1000 + D), 4)
        Y = jax.random.normal(kY, (B, D), dtype=jnp.float32)
        beta1 = jax.random.uniform(k1, (D,), dtype=jnp.float32, minval=0.1, maxval=1.0)
        beta2 = jax.random.uniform(k2, (D,), dtype=jnp.float32, minval=0.1, maxval=1.0)
        th = jax.random.normal(k3, (D,), dtype=jnp.float32) * 0.5
        out = jax.block_until_ready(piecewise_linear_forward(Y, beta1, beta2, th, **kw))
        ref = _reference(Y, beta1, beta2, th)
        assert out.shape == (B,), (out.shape, B)
        # Streaming reduction is full f32; only the tiny final densify uses the
        # MXU at HIGHEST precision, so the tolerance can be tight.
        assert jnp.allclose(out, ref, atol=1e-3, rtol=1e-4), f"mismatch B={B} D={D}"

    # Small batch (B not a multiple of 8) + D not a multiple of 128: exercises the
    # unpadded-small-batch path and zero padding on both dims.
    run_case(13, 96)
    # Multi-k-step reduction path (tile_d forces the D axis to be split).
    run_case(20, 300, tile_d=128)
    # Multiple batch tiles on the "parallel" axis + multi-chunk lane loop.
    run_case(300, 300)

    print("KERNEL_OK")
</pallas_src>

<mosaic_0001>
module attributes {stable_mosaic.version = 11 : i64} {
  func.func @_pwl_kernel(%arg0: i32, %arg1: i32, %arg2: memref<16x128xf32, #tpu.memory_space<vmem>>, %arg3: memref<8x128xf32, #tpu.memory_space<vmem>>, %arg4: memref<1x16xf32, #tpu.memory_space<vmem>>, %arg5: memref<16x128xf32, #tpu.memory_space<vmem>>) attributes {dimension_semantics = [#tpu.dimension_semantics<parallel>, #tpu.dimension_semantics<arbitrary>], iteration_bounds = array<i64: 1, 1>, scalar_prefetch = 0 : i64, scratch_operands = 1 : i64, tpu.core_type = #tpu.core_type<tc>, window_params = [{transform_indices = @transform_0, window_bounds = array<i64: 16, 128>}, {transform_indices = @transform_1, window_bounds = array<i64: 8, 128>}, {transform_indices = @transform_2, window_bounds = array<i64: 1, 16>}]} {
    %c0_i32 = arith.constant 0 : i32
    %0 = arith.cmpi eq, %arg1, %c0_i32 : i32
    %1 = arith.extui %0 : i1 to i32
    %c0_i32_0 = arith.constant 0 : i32
    %2 = arith.cmpi ne, %1, %c0_i32_0 : i32
    scf.if %2 {
      %cst = arith.constant 0.000000e+00 : f32
      %23 = vector.broadcast %cst : f32 to vector<16x128xf32>
      %c0_13 = arith.constant 0 : index
      %c0_14 = arith.constant 0 : index
      %24 = vector.load %arg5[%c0_13, %c0_14] : memref<16x128xf32, #tpu.memory_space<vmem>>, vector<16x128xf32>
      tpu.vector_store %arg5[%c0_13, %c0_14], %23 {strides = array<i32>} : memref<16x128xf32, #tpu.memory_space<vmem>>, vector<16x128xf32>,
    } else {
    }
    %c0 = arith.constant 0 : index
    %c0_1 = arith.constant 0 : index
    %3 = vector.load %arg2[%c0, %c0_1] : memref<16x128xf32, #tpu.memory_space<vmem>>, vector<16x128xf32>
    %c0_2 = arith.constant 0 : index
    %c0_3 = arith.constant 0 : index
    %4 = vector.load %arg3[%c0_2, %c0_3] : memref<8x128xf32, #tpu.memory_space<vmem>>, vector<1x128xf32>
    %c1 = arith.constant 1 : index
    %c0_4 = arith.constant 0 : index
    %5 = vector.load %arg3[%c1, %c0_4] : memref<8x128xf32, #tpu.memory_space<vmem>>, vector<1x128xf32>
    %c2 = arith.constant 2 : index
    %c0_5 = arith.constant 0 : index
    %6 = vector.load %arg3[%c2, %c0_5] : memref<8x128xf32, #tpu.memory_space<vmem>>, vector<1x128xf32>
    %c3 = arith.constant 3 : index
    %c0_6 = arith.constant 0 : index
    %7 = vector.load %arg3[%c3, %c0_6] : memref<8x128xf32, #tpu.memory_space<vmem>>, vector<1x128xf32>
    %8 = vector.broadcast %6 : vector<1x128xf32> to vector<16x128xf32>
    %9 = arith.cmpf olt, %3, %8 : vector<16x128xf32>
    %10 = vector.broadcast %4 : vector<1x128xf32> to vector<16x128xf32>
    %11 = arith.mulf %3, %10 : vector<16x128xf32>
    %12 = vector.broadcast %7 : vector<1x128xf32> to vector<16x128xf32>
    %13 = arith.addf %11, %12 : vector<16x128xf32>
    %14 = vector.broadcast %5 : vector<1x128xf32> to vector<16x128xf32>
    %15 = arith.mulf %3, %14 : vector<16x128xf32>
    %16 = arith.select %9, %13, %15 : vector<16x128xi1>, vector<16x128xf32>
    %c0_7 = arith.constant 0 : index
    %c0_8 = arith.constant 0 : index
    %17 = vector.load %arg5[%c0_7, %c0_8] : memref<16x128xf32, #tpu.memory_space<vmem>>, vector<16x128xf32>
    %18 = arith.addf %17, %16 : vector<16x128xf32>
    %c0_9 = arith.constant 0 : index
    %c0_10 = arith.constant 0 : index
    %19 = vector.load %arg5[%c0_9, %c0_10] : memref<16x128xf32, #tpu.memory_space<vmem>>, vector<16x128xf32>
    tpu.vector_store %arg5[%c0_9, %c0_10], %18 {strides = array<i32>} : memref<16x128xf32, #tpu.memory_space<vmem>>, vector<16x128xf32>,
    %c0_i32_11 = arith.constant 0 : i32
    %20 = arith.cmpi eq, %arg1, %c0_i32_11 : i32
    %21 = arith.extui %20 : i1 to i32
    %c0_i32_12 = arith.constant 0 : i32
    %22 = arith.cmpi ne, %21, %c0_i32_12 : i32
    scf.if %22 {
      %cst = arith.constant 1.000000e+00 : f32
      %23 = vector.broadcast %cst : f32 to vector<8x128xf32>
      %c0_13 = arith.constant 0 : index
      %c0_14 = arith.constant 0 : index
      %24 = vector.load %arg5[%c0_13, %c0_14] : memref<16x128xf32, #tpu.memory_space<vmem>>, vector<16x128xf32>
      %cst_15 = arith.constant dense<0.000000e+00> : vector<8x16xf32>
      %25 = tpu.matmul %23, %24, %cst_15 {dimension_numbers = #tpu.dot_dimension_numbers<[1], [1], [0], [0], [0, 0, 1, 0], [], []>, precision = #tpu.contract_precision<fp32>} : vector<8x128xf32>, vector<16x128xf32>, vector<8x16xf32> -> vector<8x16xf32>
      %26 = vector.extract_strided_slice %25 {offsets = [0, 0], sizes = [1, 16], strides = [1, 1]} : vector<8x16xf32> to vector<1x16xf32>
      %c0_16 = arith.constant 0 : index
      %c0_17 = arith.constant 0 : index
      %27 = vector.load %arg4[%c0_16, %c0_17] : memref<1x16xf32, #tpu.memory_space<vmem>>, vector<1x16xf32>
      tpu.vector_store %arg4[%c0_16, %c0_17], %26 {strides = array<i32>} : memref<1x16xf32, #tpu.memory_space<vmem>>, vector<1x16xf32>,
    } else {
    }
    return
  }
  func.func @transform_0(%arg0: i32, %arg1: i32) -> (i32, i32) {
    %c0_i32 = arith.constant 0 : i32
    return %arg0, %arg1 : i32, i32
  }
  func.func @transform_1(%arg0: i32, %arg1: i32) -> (i32, i32) {
    %c0_i32 = arith.constant 0 : i32
    %c0_i32_0 = arith.constant 0 : i32
    return %c0_i32, %arg1 : i32, i32
  }
  func.func @transform_2(%arg0: i32, %arg1: i32) -> (i32, i32) {
    %c0_i32 = arith.constant 0 : i32
    %c0_i32_0 = arith.constant 0 : i32
    return %c0_i32, %arg0 : i32, i32
  }
}

</mosaic_0001>

<llo_original>
// kernel: tpu_custom_call.1
$region0: #{tpu_custom_call.1}
  #allocation0 [shape = 'u32[]', space=smem, size = 0x4, offset = 0x4, fixed_abs, tag = 'smem constant byte address 0x4 - core index']
  #allocation1 [shape = 'u32[144,128]{1,0:T(1,128)}', space=vmem, size = 0x12000, scoped, tag = 'internal scratch']
  #allocation2 [shape = 'f32[16,128]{1,0:T(8,128)}', space=vmem, size = 0x2000, scoped, tag = 'scratch operand']
  %s0 = inlined_call_operand.hbm [shape: f32[16,128], index: 0, kind: input, shape index: {}]
  %s1 = inlined_call_operand.hbm [shape: f32[8,128], index: 1, kind: input, shape index: {}]
  %s2 = inlined_call_operand.hbm [shape: f32[1,16], index: 2, kind: output, shape index: {}]
  %s3 = sld [smem:[#allocation0]]
  $region34: #{tpu_custom_call.1} parent=0
    _
  %s5 = ssub.s32 1, %s3
  %s6 = scalar_select 0, %s5, %s3
  $region1: #{tpu_custom_call.1} parent=0
    #allocation3 [shape = 'u8[8192]{0}', space=vmem, size = 0x2000, scoped, tag = 'input window, operand 0, single buffered']
    #allocation4 [shape = 's32[1]{0}', space=sflag, size = 0x4, scoped, tag = 'scoped memory for tpu_custom_call.1']
    #allocation5 [shape = 's32[1]{0}', space=sflag, size = 0x4, scoped, tag = 'scoped memory for tpu_custom_call.1']
    #allocation6 [shape = 'u8[4096]{0}', space=vmem, size = 0x1000, scoped, tag = 'input window, operand 1, single buffered']
    #allocation7 [shape = 's32[1]{0}', space=sflag, size = 0x4, scoped, tag = 'scoped memory for tpu_custom_call.1']
    #allocation8 [shape = 'u8[512]{0}', space=vmem, size = 0x400, scoped, tag = 'output window, operand 0, single buffered']
    %7 = vsyncpa [#allocation4], 0
    %8 = vsyncpa [#allocation7], 0
    %9 = vsyncpa [#allocation5], 0
    // Predicated region
    $region2: #{tpu_custom_call.1} parent=1 // pred_check
      _
    $region3: #{tpu_custom_call.1} parent=1 // pred_check_branch
      %11 = sbr.rel (0) target = $region5
    $region4: #{tpu_custom_call.1} parent=1 // pred_region
      %s13 = ssub.s32 256, 256
      %14 = vsyncadd [#allocation4], %s13
      %s15 = sshll.u32 [#allocation3], 4
      %s16 = int_to_ptr.vmem [resolvable:$true] %s15
      %21 = dma.hbm_to_vmem [thread:$0]  %s0, 256, %s16, [#allocation4], 128, 128, 8
    $region5: #{tpu_custom_call.1} parent=1 // pred_fallthru
      _
    // Predicated region
    $region6: #{tpu_custom_call.1} parent=1 // pred_check
      _
    $region7: #{tpu_custom_call.1} parent=1 // pred_check_branch
      %23 = sbr.rel (0) target = $region9
    $region8: #{tpu_custom_call.1} parent=1 // pred_region
      %s25 = ssub.s32 128, 128
      %26 = vsyncadd [#allocation7], %s25
      %s28 = sshll.u32 [#allocation6], 4
      %s29 = int_to_ptr.vmem [resolvable:$true] %s28
      %31 = dma.hbm_to_vmem [thread:$0]  %s1, 128, %s29, [#allocation7]
    $region9: #{tpu_custom_call.1} parent=1 // pred_fallthru
      _
    // Predicated region
    $region10: #{tpu_custom_call.1} parent=1 // pred_check
      _
    $region11: #{tpu_custom_call.1} parent=1 // pred_check_branch
      %33 = sbr.rel (0) target = $region13
    $region12: #{tpu_custom_call.1} parent=1 // pred_region
      %34 = dma.done [#allocation4], 256
    $region13: #{tpu_custom_call.1} parent=1 // pred_fallthru
      _
    // Predicated region
    $region14: #{tpu_custom_call.1} parent=1 // pred_check
      _
    $region15: #{tpu_custom_call.1} parent=1 // pred_check_branch
      %36 = sbr.rel (0) target = $region17
    $region16: #{tpu_custom_call.1} parent=1 // pred_region
      %37 = dma.done [#allocation7], 128
    $region17: #{tpu_custom_call.1} parent=1 // pred_fallthru
      _
    %p38 = scmp.eq.s32.totalorder 0, 0
    // Predicated region
    $region18: #{tpu_custom_call.1} parent=1 // pred_check
      %p39 = pneg %p38
    $region19: #{tpu_custom_call.1} parent=1 // pred_check_branch
      %41 = sbr.rel (%p39) target = $region21
    $region20: #{tpu_custom_call.1} parent=1 // pred_region
      %42 = vst [vmem:[#allocation2] sm:$0xff] 0.0
      %43 = vst [vmem:[#allocation2 + $0x8] sm:$0xff] 0.0
    $region21: #{tpu_custom_call.1} parent=1 // pred_fallthru
      _
    %v44 = vld [vmem:[#allocation3] sm:$0xff]
    %v45 = vld [vmem:[#allocation3 + $0x8] sm:$0xff]
    %v46 = vld [vmem:[#allocation6] sm:$0x1]
    %v47 = vld [vmem:[#allocation6 + $0x1] sm:$0x1]
    %v48 = vld [vmem:[#allocation6 + $0x2] sm:$0x1]
    %v49 = vld [vmem:[#allocation6 + $0x3] sm:$0x1]
    %v50 = vlaneseq
    %v51 = vshrl.u32 %v50, 7
    %v52 = vsub.s32 0, %v51
    %v53 = vrot.slane %v48, %v52
    %vm54 = vcmp.lt.f32.partialorder %v44, %v53
    %vm55 = vcmp.lt.f32.partialorder %v45, %v53
    %v56 = vlaneseq
    %v57 = vshrl.u32 %v56, 7
    %v58 = vsub.s32 0, %v57
    %v59 = vrot.slane %v46, %v58
    %v60 = vmul.f32 %v44, %v59
    %v61 = vmul.f32 %v45, %v59
    %v62 = vlaneseq
    %v63 = vshrl.u32 %v62, 7
    %v64 = vsub.s32 0, %v63
    %v65 = vrot.slane %v49, %v64
    %v66 = vadd.f32 %v60, %v65
    %v67 = vadd.f32 %v61, %v65
    %v68 = vlaneseq
    %v69 = vshrl.u32 %v68, 7
    %v70 = vsub.s32 0, %v69
    %v71 = vrot.slane %v47, %v70
    %v72 = vmul.f32 %v44, %v71
    %v73 = vmul.f32 %v45, %v71
    %v74 = vsel %vm54, %v66, %v72
    %v75 = vsel %vm55, %v67, %v73
    %v76 = vld [vmem:[#allocation2] sm:$0xff]
    %v77 = vld [vmem:[#allocation2 + $0x8] sm:$0xff]
    %v78 = vadd.f32 %v76, %v74
    %v79 = vadd.f32 %v77, %v75
    %80 = vst [vmem:[#allocation2] sm:$0xff] %v78
    %81 = vst [vmem:[#allocation2 + $0x8] sm:$0xff] %v79
    // Predicated region
    $region22: #{tpu_custom_call.1} parent=1 // pred_check
      %p82 = pneg %p38
    $region23: #{tpu_custom_call.1} parent=1 // pred_check_branch
      %84 = sbr.rel (%p82) target = $region25
    $region24: #{tpu_custom_call.1} parent=1 // pred_region
      %v85 = vld [vmem:[#allocation2] sm:$0xff]
      %v86 = vld [vmem:[#allocation2 + $0x8] sm:$0xff]
      %87 = vmatprep.subr.mxu0 0.0
      %v88 = vand.u32 %v85, 4294901760
      %89 = vmatpush1.xpose.msra.mxu0 %v88
      %90 = vmatprep.subr.mxu0 0.0
      %v91 = vand.u32 %v86, 4294901760
      %92 = vmatpush1.xpose.msra.mxu0 %v91
      %93 = vmatprep.subr.mxu0 0.0
      %94 = vmatpush1.xpose.msra.mxu0 0.0
      %95 = vmatprep.subr.mxu0 0.0
      %96 = vmatpush1.xpose.msra.mxu0 0.0
      %97 = vmatprep.subr.mxu0 0.0
      %98 = vmatpush1.xpose.msra.mxu0 0.0
      %99 = vmatprep.subr.mxu0 0.0
      %100 = vmatpush1.xpose.msra.mxu0 0.0
      %101 = vmatprep.subr.mxu0 0.0
      %102 = vmatpush1.xpose.msra.mxu0 0.0
      %103 = vmatprep.subr.mxu0 0.0
      %104 = vmatpush1.xpose.msra.mxu0 0.0
      %105 = vmatprep.subr.mxu0 0.0
      %106 = vmatpush1.xpose.msra.mxu0 0.0
      %107 = vmatprep.subr.mxu0 0.0
      %108 = vmatpush1.xpose.msra.mxu0 0.0
      %109 = vmatprep.subr.mxu0 0.0
      %110 = vmatpush1.xpose.msra.mxu0 0.0
      %111 = vmatprep.subr.mxu0 0.0
      %112 = vmatpush1.xpose.msra.mxu0 0.0
      %113 = vmatprep.subr.mxu0 0.0
      %114 = vmatpush1.xpose.msra.mxu0 0.0
      %115 = vmatprep.subr.mxu0 0.0
      %116 = vmatpush1.xpose.msra.mxu0 0.0
      %117 = vmatprep.subr.mxu0 0.0
      %118 = vmatpush1.xpose.msra.mxu0 0.0
      %119 = vmatprep.subr.mxu0 0.0
      %120 = vmatpush1.xpose.msra.mxu0 0.0
      %121 = vmatprep.subr.mxu0 0.0
      %122 = vmatpush1.xpose.msra.mxu0 0.0
      %123 = vmatprep.subr.mxu0 0.0
      %124 = vmatpush1.xpose.msra.mxu0 0.0
      %125 = vmatprep.subr.mxu0 0.0
      %126 = vmatpush1.xpose.msra.mxu0 0.0
      %127 = vmatprep.subr.mxu0 0.0
      %128 = vmatpush1.xpose.msra.mxu0 0.0
      %129 = vmatprep.subr.mxu0 0.0
      %130 = vmatpush1.xpose.msra.mxu0 0.0
      %131 = vmatprep.subr.mxu0 0.0
      %132 = vmatpush1.xpose.msra.mxu0 0.0
      %133 = vmatprep.subr.mxu0 0.0
      %134 = vmatpush1.xpose.msra.mxu0 0.0
      %135 = vmatprep.subr.mxu0 0.0
      %136 = vmatpush1.xpose.msra.mxu0 0.0
      %137 = vmatprep.subr.mxu0 0.0
      %138 = vmatpush1.xpose.msra.mxu0 0.0
      %139 = vmatprep.subr.mxu0 0.0
      %140 = vmatpush1.xpose.msra.mxu0 0.0
      %141 = vmatprep.subr.mxu0 0.0
      %142 = vmatpush1.xpose.msra.mxu0 0.0
      %143 = vmatprep.subr.mxu0 0.0
      %144 = vmatpush1.xpose.msra.mxu0 0.0
      %145 = vmatprep.subr.mxu0 0.0
      %146 = vmatpush1.xpose.msra.mxu0 0.0
      %147 = vmatprep.subr.mxu0 0.0
      %148 = vmatpush1.xpose.msra.mxu0 0.0
      %149 = vmatprep.subr.mxu0 0.0
      %150 = vmatpush1.xpose.msra.mxu0 0.0
      %151 = vmatprep.subr.mxu0 0.0
      %152 = vmatpush1.xpose.msra.mxu0 0.0
      %153 = vmatprep.mubr.f32.mxu0 0.0
      %154 = vmatmul.mubr.f32.gmra.mrb[0].mxu0 0.0
      %v155 = vpop.f32.mrb[0].mxu0
      %v156 = vadd.f32 0.0, %v155
      %v157 = vpop.f32.mrb[0].mxu0
      %158 = vdwg.mxu0
      %159 = vmatprep.subr.mxu0 0.0
      %v160 = vand.u32 %v85, 4294901760
      %v161 = vsub.f32 %v85, %v160
      %v162 = vand.u32 %v161, 4294901760
      %v163 = vsub.f32 %v161, %v162
      %v164 = vand.u32 %v163, 4294901760
      %165 = vmatpush1.xpose.msra.mxu0 %v164
      %166 = vmatprep.subr.mxu0 0.0
      %v167 = vand.u32 %v86, 4294901760
      %v168 = vsub.f32 %v86, %v167
      %v169 = vand.u32 %v168, 4294901760
      %v170 = vsub.f32 %v168, %v169
      %v171 = vand.u32 %v170, 4294901760
      %172 = vmatpush1.xpose.msra.mxu0 %v171
      %173 = vmatprep.subr.mxu0 0.0
      %174 = vmatpush1.xpose.msra.mxu0 0.0
      %175 = vmatprep.subr.mxu0 0.0
      %176 = vmatpush1.xpose.msra.mxu0 0.0
      %177 = vmatprep.subr.mxu0 0.0
      %178 = vmatpush1.xpose.msra.mxu0 0.0
      %179 = vmatprep.subr.mxu0 0.0
      %180 = vmatpush1.xpose.msra.mxu0 0.0
      %181 = vmatprep.subr.mxu0 0.0
      %182 = vmatpush1.xpose.msra.mxu0 0.0
      %183 = vmatprep.subr.mxu0 0.0
      %184 = vmatpush1.xpose.msra.mxu0 0.0
      %185 = vmatprep.subr.mxu0 0.0
      %186 = vmatpush1.xpose.msra.mxu0 0.0
      %187 = vmatprep.subr.mxu0 0.0
      %188 = vmatpush1.xpose.msra.mxu0 0.0
      %189 = vmatprep.subr.mxu0 0.0
      %190 = vmatpush1.xpose.msra.mxu0 0.0
      %191 = vmatprep.subr.mxu0 0.0
      %192 = vmatpush1.xpose.msra.mxu0 0.0
      %193 = vmatprep.subr.mxu0 0.0
      %194 = vmatpush1.xpose.msra.mxu0 0.0
      %195 = vmatprep.subr.mxu0 0.0
      %196 = vmatpush1.xpose.msra.mxu0 0.0
      %197 = vmatprep.subr.mxu0 0.0
      %198 = vmatpush1.xpose.msra.mxu0 0.0
      %199 = vmatprep.subr.mxu0 0.0
      %200 = vmatpush1.xpose.msra.mxu0 0.0
      %201 = vmatprep.subr.mxu0 0.0
      %202 = vmatpush1.xpose.msra.mxu0 0.0
      %203 = vmatprep.subr.mxu0 0.0
      %204 = vmatpush1.xpose.msra.mxu0 0.0
      %205 = vmatprep.subr.mxu0 0.0
      %206 = vmatpush1.xpose.msra.mxu0 0.0
      %207 = vmatprep.subr.mxu0 0.0
      %208 = vmatpush1.xpose.msra.mxu0 0.0
      %209 = vmatprep.subr.mxu0 0.0
      %210 = vmatpush1.xpose.msra.mxu0 0.0
      %211 = vmatprep.subr.mxu0 0.0
      %212 = vmatpush1.xpose.msra.mxu0 0.0
      %213 = vmatprep.subr.mxu0 0.0
      %214 = vmatpush1.xpose.msra.mxu0 0.0
      %215 = vmatprep.subr.mxu0 0.0
      %216 = vmatpush1.xpose.msra.mxu0 0.0
      %217 = vmatprep.subr.mxu0 0.0
      %218 = vmatpush1.xpose.msra.mxu0 0.0
      %219 = vmatprep.subr.mxu0 0.0
      %220 = vmatpush1.xpose.msra.mxu0 0.0
      %221 = vmatprep.subr.mxu0 0.0
      %222 = vmatpush1.xpose.msra.mxu0 0.0
      %223 = vmatprep.subr.mxu0 0.0
      %224 = vmatpush1.xpose.msra.mxu0 0.0
      %225 = vmatprep.subr.mxu0 0.0
      %226 = vmatpush1.xpose.msra.mxu0 0.0
      %227 = vmatprep.subr.mxu0 0.0
      %228 = vmatpush1.xpose.msra.mxu0 0.0
      %229 = vmatprep.subr.mxu0 0.0
      %230 = vmatpush1.xpose.msra.mxu0 0.0
      %231 = vmatprep.subr.mxu0 0.0
      %232 = vmatpush1.xpose.msra.mxu0 0.0
      %233 = vmatprep.mubr.f32.mxu0 0.0
      %234 = vmatmul.mubr.f32.gmra.mrb[0].mxu0 1.0
      %v235 = vpop.f32.mrb[0].mxu0
      %v236 = vadd.f32 %v156, %v235
      %v237 = vpop.f32.mrb[0].mxu0
      %238 = vdwg.mxu0
      %239 = vmatprep.subr.mxu0 0.0
      %v240 = vand.u32 %v85, 4294901760
      %v241 = vsub.f32 %v85, %v240
      %242 = vmatpush1.xpose.msra.mxu0 %v241
      %243 = vmatprep.subr.mxu0 0.0
      %v244 = vand.u32 %v86, 4294901760
      %v245 = vsub.f32 %v86, %v244
      %246 = vmatpush1.xpose.msra.mxu0 %v245
      %247 = vmatprep.subr.mxu0 0.0
      %248 = vmatpush1.xpose.msra.mxu0 0.0
      %249 = vmatprep.subr.mxu0 0.0
      %250 = vmatpush1.xpose.msra.mxu0 0.0
      %251 = vmatprep.subr.mxu0 0.0
      %252 = vmatpush1.xpose.msra.mxu0 0.0
      %253 = vmatprep.subr.mxu0 0.0
      %254 = vmatpush1.xpose.msra.mxu0 0.0
      %255 = vmatprep.subr.mxu0 0.0
      %256 = vmatpush1.xpose.msra.mxu0 0.0
      %257 = vmatprep.subr.mxu0 0.0
      %258 = vmatpush1.xpose.msra.mxu0 0.0
      %259 = vmatprep.subr.mxu0 0.0
      %260 = vmatpush1.xpose.msra.mxu0 0.0
      %261 = vmatprep.subr.mxu0 0.0
      %262 = vmatpush1.xpose.msra.mxu0 0.0
      %263 = vmatprep.subr.mxu0 0.0
      %264 = vmatpush1.xpose.msra.mxu0 0.0
      %265 = vmatprep.subr.mxu0 0.0
      %266 = vmatpush1.xpose.msra.mxu0 0.0
      %267 = vmatprep.subr.mxu0 0.0
      %268 = vmatpush1.xpose.msra.mxu0 0.0
      %269 = vmatprep.subr.mxu0 0.0
      %270 = vmatpush1.xpose.msra.mxu0 0.0
      %271 = vmatprep.subr.mxu0 0.0
      %272 = vmatpush1.xpose.msra.mxu0 0.0
      %273 = vmatprep.subr.mxu0 0.0
      %274 = vmatpush1.xpose.msra.mxu0 0.0
      %275 = vmatprep.subr.mxu0 0.0
      %276 = vmatpush1.xpose.msra.mxu0 0.0
      %277 = vmatprep.subr.mxu0 0.0
      %278 = vmatpush1.xpose.msra.mxu0 0.0
      %279 = vmatprep.subr.mxu0 0.0
      %280 = vmatpush1.xpose.msra.mxu0 0.0
      %281 = vmatprep.subr.mxu0 0.0
      %282 = vmatpush1.xpose.msra.mxu0 0.0
      %283 = vmatprep.subr.mxu0 0.0
      %284 = vmatpush1.xpose.msra.mxu0 0.0
      %285 = vmatprep.subr.mxu0 0.0
      %286 = vmatpush1.xpose.msra.mxu0 0.0
      %287 = vmatprep.subr.mxu0 0.0
      %288 = vmatpush1.xpose.msra.mxu0 0.0
      %289 = vmatprep.subr.mxu0 0.0
      %290 = vmatpush1.xpose.msra.mxu0 0.0
      %291 = vmatprep.subr.mxu0 0.0
      %292 = vmatpush1.xpose.msra.mxu0 0.0
      %293 = vmatprep.subr.mxu0 0.0
      %294 = vmatpush1.xpose.msra.mxu0 0.0
      %295 = vmatprep.subr.mxu0 0.0
      %296 = vmatpush1.xpose.msra.mxu0 0.0
      %297 = vmatprep.subr.mxu0 0.0
      %298 = vmatpush1.xpose.msra.mxu0 0.0
      %299 = vmatprep.subr.mxu0 0.0
      %300 = vmatpush1.xpose.msra.mxu0 0.0
      %301 = vmatprep.subr.mxu0 0.0
      %302 = vmatpush1.xpose.msra.mxu0 0.0
      %303 = vmatprep.subr.mxu0 0.0
      %304 = vmatpush1.xpose.msra.mxu0 0.0
      %305 = vmatprep.subr.mxu0 0.0
      %306 = vmatpush1.xpose.msra.mxu0 0.0
      %307 = vmatprep.mubr.f32.mxu0 0.0
      %308 = vmatmul.mubr.f32.gmra.mrb[0].mxu0 0.0
      %v309 = vpop.f32.mrb[0].mxu0
      %v310 = vadd.f32 %v236, %v309
      %v311 = vpop.f32.mrb[0].mxu0
      %312 = vdwg.mxu0
      %313 = vmatprep.subr.mxu0 0.0
      %v314 = vand.u32 %v85, 4294901760
      %315 = vmatpush1.xpose.msra.mxu0 %v314
      %316 = vmatprep.subr.mxu0 0.0
      %v317 = vand.u32 %v86, 4294901760
      %318 = vmatpush1.xpose.msra.mxu0 %v317
      %319 = vmatprep.subr.mxu0 0.0
      %320 = vmatpush1.xpose.msra.mxu0 0.0
      %321 = vmatprep.subr.mxu0 0.0
      %322 = vmatpush1.xpose.msra.mxu0 0.0
      %323 = vmatprep.subr.mxu0 0.0
      %324 = vmatpush1.xpose.msra.mxu0 0.0
      %325 = vmatprep.subr.mxu0 0.0
      %326 = vmatpush1.xpose.msra.mxu0 0.0
      %327 = vmatprep.subr.mxu0 0.0
      %328 = vmatpush1.xpose.msra.mxu0 0.0
      %329 = vmatprep.subr.mxu0 0.0
      %330 = vmatpush1.xpose.msra.mxu0 0.0
      %331 = vmatprep.subr.mxu0 0.0
      %332 = vmatpush1.xpose.msra.mxu0 0.0
      %333 = vmatprep.subr.mxu0 0.0
      %334 = vmatpush1.xpose.msra.mxu0 0.0
      %335 = vmatprep.subr.mxu0 0.0
      %336 = vmatpush1.xpose.msra.mxu0 0.0
      %337 = vmatprep.subr.mxu0 0.0
      %338 = vmatpush1.xpose.msra.mxu0 0.0
      %339 = vmatprep.subr.mxu0 0.0
      %340 = vmatpush1.xpose.msra.mxu0 0.0
      %341 = vmatprep.subr.mxu0 0.0
      %342 = vmatpush1.xpose.msra.mxu0 0.0
      %343 = vmatprep.subr.mxu0 0.0
      %344 = vmatpush1.xpose.msra.mxu0 0.0
      %345 = vmatprep.subr.mxu0 0.0
      %346 = vmatpush1.xpose.msra.mxu0 0.0
      %347 = vmatprep.subr.mxu0 0.0
      %348 = vmatpush1.xpose.msra.mxu0 0.0
      %349 = vmatprep.subr.mxu0 0.0
      %350 = vmatpush1.xpose.msra.mxu0 0.0
      %351 = vmatprep.subr.mxu0 0.0
      %352 = vmatpush1.xpose.msra.mxu0 0.0
      %353 = vmatprep.subr.mxu0 0.0
      %354 = vmatpush1.xpose.msra.mxu0 0.0
      %355 = vmatprep.subr.mxu0 0.0
      %356 = vmatpush1.xpose.msra.mxu0 0.0
      %357 = vmatprep.subr.mxu0 0.0
      %358 = vmatpush1.xpose.msra.mxu0 0.0
      %359 = vmatprep.subr.mxu0 0.0
      %360 = vmatpush1.xpose.msra.mxu0 0.0
      %361 = vmatprep.subr.mxu0 0.0
      %362 = vmatpush1.xpose.msra.mxu0 0.0
      %363 = vmatprep.subr.mxu0 0.0
      %364 = vmatpush1.xpose.msra.mxu0 0.0
      %365 = vmatprep.subr.mxu0 0.0
      %366 = vmatpush1.xpose.msra.mxu0 0.0
      %367 = vmatprep.subr.mxu0 0.0
      %368 = vmatpush1.xpose.msra.mxu0 0.0
      %369 = vmatprep.subr.mxu0 0.0
      %370 = vmatpush1.xpose.msra.mxu0 0.0
      %371 = vmatprep.subr.mxu0 0.0
      %372 = vmatpush1.xpose.msra.mxu0 0.0
      %373 = vmatprep.subr.mxu0 0.0
      %374 = vmatpush1.xpose.msra.mxu0 0.0
      %375 = vmatprep.subr.mxu0 0.0
      %376 = vmatpush1.xpose.msra.mxu0 0.0
      %377 = vmatprep.subr.mxu0 0.0
      %378 = vmatpush1.xpose.msra.mxu0 0.0
      %379 = vmatprep.mubr.f32.mxu0 0.0
      %380 = vmatmul.mubr.f32.gmra.mrb[0].mxu0 0.0
      %v381 = vpop.f32.mrb[0].mxu0
      %v382 = vadd.f32 %v310, %v381
      %v383 = vpop.f32.mrb[0].mxu0
      %384 = vdwg.mxu0
      %385 = vmatprep.subr.mxu0 0.0
      %v386 = vand.u32 %v85, 4294901760
      %v387 = vsub.f32 %v85, %v386
      %v388 = vand.u32 %v387, 4294901760
      %389 = vmatpush1.xpose.msra.mxu0 %v388
      %390 = vmatprep.subr.mxu0 0.0
      %v391 = vand.u32 %v86, 4294901760
      %v392 = vsub.f32 %v86, %v391
      %v393 = vand.u32 %v392, 4294901760
      %394 = vmatpush1.xpose.msra.mxu0 %v393
      %395 = vmatprep.subr.mxu0 0.0
      %396 = vmatpush1.xpose.msra.mxu0 0.0
      %397 = vmatprep.subr.mxu0 0.0
      %398 = vmatpush1.xpose.msra.mxu0 0.0
      %399 = vmatprep.subr.mxu0 0.0
      %400 = vmatpush1.xpose.msra.mxu0 0.0
      %401 = vmatprep.subr.mxu0 0.0
      %402 = vmatpush1.xpose.msra.mxu0 0.0
      %403 = vmatprep.subr.mxu0 0.0
      %404 = vmatpush1.xpose.msra.mxu0 0.0
      %405 = vmatprep.subr.mxu0 0.0
      %406 = vmatpush1.xpose.msra.mxu0 0.0
      %407 = vmatprep.subr.mxu0 0.0
      %408 = vmatpush1.xpose.msra.mxu0 0.0
      %409 = vmatprep.subr.mxu0 0.0
      %410 = vmatpush1.xpose.msra.mxu0 0.0
      %411 = vmatprep.subr.mxu0 0.0
      %412 = vmatpush1.xpose.msra.mxu0 0.0
      %413 = vmatprep.subr.mxu0 0.0
      %414 = vmatpush1.xpose.msra.mxu0 0.0
      %415 = vmatprep.subr.mxu0 0.0
      %416 = vmatpush1.xpose.msra.mxu0 0.0
      %417 = vmatprep.subr.mxu0 0.0
      %418 = vmatpush1.xpose.msra.mxu0 0.0
      %419 = vmatprep.subr.mxu0 0.0
      %420 = vmatpush1.xpose.msra.mxu0 0.0
      %421 = vmatprep.subr.mxu0 0.0
      %422 = vmatpush1.xpose.msra.mxu0 0.0
      %423 = vmatprep.subr.mxu0 0.0
      %424 = vmatpush1.xpose.msra.mxu0 0.0
      %425 = vmatprep.subr.mxu0 0.0
      %426 = vmatpush1.xpose.msra.mxu0 0.0
      %427 = vmatprep.subr.mxu0 0.0
      %428 = vmatpush1.xpose.msra.mxu0 0.0
      %429 = vmatprep.subr.mxu0 0.0
      %430 = vmatpush1.xpose.msra.mxu0 0.0
      %431 = vmatprep.subr.mxu0 0.0
      %432 = vmatpush1.xpose.msra.mxu0 0.0
      %433 = vmatprep.subr.mxu0 0.0
      %434 = vmatpush1.xpose.msra.mxu0 0.0
      %435 = vmatprep.subr.mxu0 0.0
      %436 = vmatpush1.xpose.msra.mxu0 0.0
      %437 = vmatprep.subr.mxu0 0.0
      %438 = vmatpush1.xpose.msra.mxu0 0.0
      %439 = vmatprep.subr.mxu0 0.0
      %440 = vmatpush1.xpose.msra.mxu0 0.0
      %441 = vmatprep.subr.mxu0 0.0
      %442 = vmatpush1.xpose.msra.mxu0 0.0
      %443 = vmatprep.subr.mxu0 0.0
      %444 = vmatpush1.xpose.msra.mxu0 0.0
      %445 = vmatprep.subr.mxu0 0.0
      %446 = vmatpush1.xpose.msra.mxu0 0.0
      %447 = vmatprep.subr.mxu0 0.0
      %448 = vmatpush1.xpose.msra.mxu0 0.0
      %449 = vmatprep.subr.mxu0 0.0
      %450 = vmatpush1.xpose.msra.mxu0 0.0
      %451 = vmatprep.subr.mxu0 0.0
      %452 = vmatpush1.xpose.msra.mxu0 0.0
      %453 = vmatprep.subr.mxu0 0.0
      %454 = vmatpush1.xpose.msra.mxu0 0.0
      %455 = vmatprep.mubr.f32.mxu0 0.0
      %456 = vmatmul.mubr.f32.gmra.mrb[0].mxu0 1.0
      %v457 = vpop.f32.mrb[0].mxu0
      %v458 = vadd.f32 %v382, %v457
      %v459 = vpop.f32.mrb[0].mxu0
      %460 = vdwg.mxu0
      %461 = vmatprep.subr.mxu0 0.0
      %v462 = vand.u32 %v85, 4294901760
      %463 = vmatpush1.xpose.msra.mxu0 %v462
      %464 = vmatprep.subr.mxu0 0.0
      %v465 = vand.u32 %v86, 4294901760
      %466 = vmatpush1.xpose.msra.mxu0 %v465
      %467 = vmatprep.subr.mxu0 0.0
      %468 = vmatpush1.xpose.msra.mxu0 0.0
      %469 = vmatprep.subr.mxu0 0.0
      %470 = vmatpush1.xpose.msra.mxu0 0.0
      %471 = vmatprep.subr.mxu0 0.0
      %472 = vmatpush1.xpose.msra.mxu0 0.0
      %473 = vmatprep.subr.mxu0 0.0
      %474 = vmatpush1.xpose.msra.mxu0 0.0
      %475 = vmatprep.subr.mxu0 0.0
      %476 = vmatpush1.xpose.msra.mxu0 0.0
      %477 = vmatprep.subr.mxu0 0.0
      %478 = vmatpush1.xpose.msra.mxu0 0.0
      %479 = vmatprep.subr.mxu0 0.0
      %480 = vmatpush1.xpose.msra.mxu0 0.0
      %481 = vmatprep.subr.mxu0 0.0
      %482 = vmatpush1.xpose.msra.mxu0 0.0
      %483 = vmatprep.subr.mxu0 0.0
      %484 = vmatpush1.xpose.msra.mxu0 0.0
      %485 = vmatprep.subr.mxu0 0.0
      %486 = vmatpush1.xpose.msra.mxu0 0.0
      %487 = vmatprep.subr.mxu0 0.0
      %488 = vmatpush1.xpose.msra.mxu0 0.0
      %489 = vmatprep.subr.mxu0 0.0
      %490 = vmatpush1.xpose.msra.mxu0 0.0
      %491 = vmatprep.subr.mxu0 0.0
      %492 = vmatpush1.xpose.msra.mxu0 0.0
      %493 = vmatprep.subr.mxu0 0.0
      %494 = vmatpush1.xpose.msra.mxu0 0.0
      %495 = vmatprep.subr.mxu0 0.0
      %496 = vmatpush1.xpose.msra.mxu0 0.0
      %497 = vmatprep.subr.mxu0 0.0
      %498 = vmatpush1.xpose.msra.mxu0 0.0
      %499 = vmatprep.subr.mxu0 0.0
      %500 = vmatpush1.xpose.msra.mxu0 0.0
      %501 = vmatprep.subr.mxu0 0.0
      %502 = vmatpush1.xpose.msra.mxu0 0.0
      %503 = vmatprep.subr.mxu0 0.0
      %504 = vmatpush1.xpose.msra.mxu0 0.0
      %505 = vmatprep.subr.mxu0 0.0
      %506 = vmatpush1.xpose.msra.mxu0 0.0
      %507 = vmatprep.subr.mxu0 0.0
      %508 = vmatpush1.xpose.msra.mxu0 0.0
      %509 = vmatprep.subr.mxu0 0.0
      %510 = vmatpush1.xpose.msra.mxu0 0.0
      %511 = vmatprep.subr.mxu0 0.0
      %512 = vmatpush1.xpose.msra.mxu0 0.0
      %513 = vmatprep.subr.mxu0 0.0
      %514 = vmatpush1.xpose.msra.mxu0 0.0
      %515 = vmatprep.subr.mxu0 0.0
      %516 = vmatpush1.xpose.msra.mxu0 0.0
      %517 = vmatprep.subr.mxu0 0.0
      %518 = vmatpush1.xpose.msra.mxu0 0.0
      %519 = vmatprep.subr.mxu0 0.0
      %520 = vmatpush1.xpose.msra.mxu0 0.0
      %521 = vmatprep.subr.mxu0 0.0
      %522 = vmatpush1.xpose.msra.mxu0 0.0
      %523 = vmatprep.subr.mxu0 0.0
      %524 = vmatpush1.xpose.msra.mxu0 0.0
      %525 = vmatprep.subr.mxu0 0.0
      %526 = vmatpush1.xpose.msra.mxu0 0.0
      %527 = vmatprep.mubr.f32.mxu0 0.0
      %528 = vmatmul.mubr.f32.gmra.mrb[0].mxu0 1.0
      %v529 = vpop.f32.mrb[0].mxu0
      %v530 = vadd.f32 %v458, %v529
      %v531 = vpop.f32.mrb[0].mxu0
      %532 = vdwg.mxu0
      %vm533 = vcmask 122880
      %534 = vst.msk [vmem:[#allocation8] sm:$0x1] %vm533, %v530
    $region25: #{tpu_custom_call.1} parent=1 // pred_fallthru
      _
    // Predicated region
    $region26: #{tpu_custom_call.1} parent=1 // pred_check
      _
    $region27: #{tpu_custom_call.1} parent=1 // pred_check_branch
      %536 = sbr.rel (0) target = $region29
    $region28: #{tpu_custom_call.1} parent=1 // pred_region
      %s538 = ssub.s32 16, 16
      %539 = vsyncadd [#allocation5], %s538
      %s541 = sshll.u32 [#allocation8], 4
      %s542 = int_to_ptr.vmem [resolvable:$true] %s541
      %544 = dma.vmem_to_hbm [thread:$0]  %s542, 16, %s2, [#allocation5]
    $region29: #{tpu_custom_call.1} parent=1 // pred_fallthru
      _
    // Predicated region
    $region30: #{tpu_custom_call.1} parent=1 // pred_check
      _
    $region31: #{tpu_custom_call.1} parent=1 // pred_check_branch
      %546 = sbr.rel (0) target = $region33
    $region32: #{tpu_custom_call.1} parent=1 // pred_region
      %547 = dma.done [#allocation5], 16
    $region33: #{tpu_custom_call.1} parent=1 // pred_fallthru
      _
    %548 = vsyncpa [#allocation4], 1
    %549 = vsyncpa [#allocation7], 1
    %550 = vsyncpa [#allocation5], 1

</llo_original>
